<compile_context>
chip_gen: v5e
topology: v5e:2x2
jax: 0.10.0
libtpu: 0.0.40
codegen_flags: <defaults>
</compile_context>

<pallas_src>
import jax
import jax.numpy as jnp
from jax.experimental import pallas as pl
from jax.experimental.pallas import tpu as pltpu


def _discriminator_kernel(x_ref, w1t_ref, b1_ref, w2_ref, b2_ref, o_ref):
    """One batch tile of the discriminator forward pass.

    x_ref   : [TM, D_in]  input activations (cast to bf16 for the MXU)
    w1t_ref : [H1, D_in]  layer-1 weight, pre-transposed, bf16
    b1_ref  : [H1, 1]     layer-1 bias, f32 (column -> broadcast over lanes)
    w2_ref  : [H1, 1]     layer-2 weight, f32 (column -> broadcast over lanes)
    b2_ref  : [1, 1]      layer-2 bias, f32 scalar in SMEM
    o_ref   : [1, TM]     sigmoid output row (lane-dense); wrapper -> (N, 1)
    """
    x_bf16 = x_ref[...].astype(jnp.bfloat16)

    # Layer 1 in transposed orientation: h_t = W1^T @ x^T  -> [H1, TM].
    # Contraction of both operands' last dims (Q.K^T pattern); bf16 in, f32 acc.
    h_t = jax.lax.dot_general(
        w1t_ref[...],
        x_bf16,
        dimension_numbers=(((1,), (1,)), ((), ())),
        preferred_element_type=jnp.float32,
    )
    h_t = jnp.tanh(h_t + b1_ref[...])  # f32; bias column broadcasts over lanes

    # Layer 2 on the VPU/XLU: per-sample dot product with w2 via elementwise
    # multiply + sublane reduction.  Result is already a lane-dense [1, TM] row.
    logits = jnp.sum(h_t * w2_ref[...], axis=0, keepdims=True) + b2_ref[0, 0]

    o_ref[...] = jax.nn.sigmoid(logits).astype(o_ref.dtype)


def discriminator_forward(x, w1, b1, w2, b2, *, tm=1024):
    """Forward pass of the PyTorch Discriminator.

    x  : [N, D_in]
    w1 : [D_in, H1]  (transpose of torch nn.Linear .weight)
    b1 : [1, H1]
    w2 : [H1, 1]
    b2 : [1, 1]
    returns o : [N, 1]
    """
    n, d_in = x.shape
    h1 = w1.shape[1]

    # Kernel-friendly parameter layouts (tiny one-time transforms).
    w1t = jnp.transpose(w1).astype(jnp.bfloat16)          # [H1, D_in]
    b1c = jnp.reshape(b1, (h1, 1)).astype(jnp.float32)    # [H1, 1]
    w2c = jnp.reshape(w2, (h1, 1)).astype(jnp.float32)    # [H1, 1]
    b2s = jnp.reshape(b2, (1, 1)).astype(jnp.float32)     # [1, 1] -> SMEM

    if n <= tm:
        # Single tile: full-array blocks, no padding needed.
        tm_eff, n_pad, x_in = n, n, x
    else:
        # Multi-tile: tile must be lane/sublane friendly; pad N up to a multiple.
        assert tm % 128 == 0, "tm must be a multiple of 128 for lane-dense output"
        tm_eff = tm
        n_pad = tm * ((n + tm - 1) // tm)
        x_in = jnp.pad(x, ((0, n_pad - n), (0, 0))) if n_pad != n else x
    grid = (n_pad // tm_eff,)

    out_row = pl.pallas_call(
        _discriminator_kernel,
        out_shape=jax.ShapeDtypeStruct((1, n_pad), jnp.float32),
        grid=grid,
        in_specs=[
            pl.BlockSpec((tm_eff, d_in), lambda i: (i, 0),
                         memory_space=pltpu.MemorySpace.VMEM),   # x tile (pipelined)
            pl.BlockSpec((h1, d_in), lambda i: (0, 0),
                         memory_space=pltpu.MemorySpace.VMEM),   # W1^T (resident)
            pl.BlockSpec((h1, 1), lambda i: (0, 0),
                         memory_space=pltpu.MemorySpace.VMEM),   # b1 column
            pl.BlockSpec((h1, 1), lambda i: (0, 0),
                         memory_space=pltpu.MemorySpace.VMEM),   # w2 column
            pl.BlockSpec(memory_space=pltpu.MemorySpace.SMEM),   # b2 scalar
        ],
        out_specs=pl.BlockSpec((1, tm_eff), lambda i: (0, i),
                               memory_space=pltpu.MemorySpace.VMEM),
        compiler_params=pltpu.CompilerParams(
            dimension_semantics=("parallel",),
            vmem_limit_bytes=32 * 1024 * 1024,
        ),
    )(x_in, w1t, b1c, w2c, b2s)

    return out_row[0, :n].reshape(n, 1)


def _init_linear(key, fan_in, fan_out):
    # Deterministic PyTorch-style init: U(-1/sqrt(fan_in), 1/sqrt(fan_in)).
    kw, kb = jax.random.split(key)
    bound = 1.0 / jnp.sqrt(jnp.float32(fan_in))
    w = jax.random.uniform(kw, (fan_in, fan_out), jnp.float32, -bound, bound)
    b = jax.random.uniform(kb, (1, fan_out), jnp.float32, -bound, bound)
    return w, b


def _reference(x, w1, b1, w2, b2):
    # Same math as Discriminator.forward, with the bf16 rounding of the
    # layer-1 MXU inputs applied so the comparison matches kernel numerics.
    xb = x.astype(jnp.bfloat16).astype(jnp.float32)
    w1b = w1.astype(jnp.bfloat16).astype(jnp.float32)
    h = jnp.tanh(jnp.dot(xb, w1b, precision=jax.lax.Precision.HIGHEST) + b1)
    logits = jnp.sum(h * w2.T, axis=-1, keepdims=True) + b2
    return jax.nn.sigmoid(logits)


if __name__ == "__main__":
    # Small shapes consistent with the module: x is [Nbatch, D_in].
    N, D_IN, H_DEC1 = 8, 32, 16

    key = jax.random.PRNGKey(0)
    kx, k1, k2, kx2 = jax.random.split(key, 4)

    x = jax.random.normal(kx, (N, D_IN), jnp.float32)
    w1, b1 = _init_linear(k1, D_IN, H_DEC1)
    w2, b2 = _init_linear(k2, H_DEC1, 1)

    # --- single-tile path (toy batch) ---
    out = jax.block_until_ready(discriminator_forward(x, w1, b1, w2, b2))
    ref = _reference(x, w1, b1, w2, b2)
    assert out.shape == (N, 1)
    assert jnp.allclose(out, ref, atol=1e-3, rtol=1e-3)

    # --- multi-tile path: exercises the batch grid, padding and pipelining ---
    N2 = 300
    x2 = jax.random.normal(kx2, (N2, D_IN), jnp.float32)
    out2 = jax.block_until_ready(discriminator_forward(x2, w1, b1, w2, b2, tm=128))
    ref2 = _reference(x2, w1, b1, w2, b2)
    assert out2.shape == (N2, 1)
    assert jnp.allclose(out2, ref2, atol=1e-3, rtol=1e-3)

    print("KERNEL_OK")
</pallas_src>

<mosaic_0001>
module attributes {stable_mosaic.version = 11 : i64} {
  func.func @_discriminator_kernel(%arg0: i32, %arg1: memref<8x32xf32, #tpu.memory_space<vmem>>, %arg2: memref<16x32xbf16, #tpu.memory_space<vmem>>, %arg3: memref<16x1xf32, #tpu.memory_space<vmem>>, %arg4: memref<16x1xf32, #tpu.memory_space<vmem>>, %arg5: memref<1x1xf32, #tpu.memory_space<smem>>, %arg6: memref<1x8xf32, #tpu.memory_space<vmem>>) attributes {dimension_semantics = [#tpu.dimension_semantics<parallel>], iteration_bounds = array<i64: 1>, scalar_prefetch = 0 : i64, scratch_operands = 0 : i64, tpu.core_type = #tpu.core_type<tc>, window_params = [{transform_indices = @transform_0, window_bounds = array<i64: 8, 32>}, {pipeline_mode = #tpu.pipeline_mode<synchronous>, transform_indices = @transform_1, window_bounds = array<i64: 16, 32>}, {pipeline_mode = #tpu.pipeline_mode<synchronous>, transform_indices = @transform_2, window_bounds = array<i64: 16, 1>}, {pipeline_mode = #tpu.pipeline_mode<synchronous>, transform_indices = @transform_3, window_bounds = array<i64: 16, 1>}, {transform_indices = @transform_4, window_bounds = array<i64: 1, 1>}, {transform_indices = @transform_5, window_bounds = array<i64: 1, 8>}]} {
    %c0 = arith.constant 0 : index
    %c0_0 = arith.constant 0 : index
    %0 = vector.load %arg1[%c0, %c0_0] : memref<8x32xf32, #tpu.memory_space<vmem>>, vector<8x32xf32>
    %1 = arith.truncf %0 : vector<8x32xf32> to vector<8x32xbf16>
    %c0_1 = arith.constant 0 : index
    %c0_2 = arith.constant 0 : index
    %2 = vector.load %arg2[%c0_1, %c0_2] : memref<16x32xbf16, #tpu.memory_space<vmem>>, vector<16x32xbf16>
    %cst = arith.constant dense<0.000000e+00> : vector<16x8xf32>
    %3 = tpu.matmul %2, %1, %cst {dimension_numbers = #tpu.dot_dimension_numbers<[1], [1], [0], [0], [0, 0, 1, 0], [], []>} : vector<16x32xbf16>, vector<8x32xbf16>, vector<16x8xf32> -> vector<16x8xf32>
    %c0_3 = arith.constant 0 : index
    %c0_4 = arith.constant 0 : index
    %4 = vector.load %arg3[%c0_3, %c0_4] : memref<16x1xf32, #tpu.memory_space<vmem>>, vector<16x1xf32>
    %5 = vector.broadcast %4 : vector<16x1xf32> to vector<16x8xf32>
    %6 = arith.addf %3, %5 : vector<16x8xf32>
    %7 = math.tanh %6 : vector<16x8xf32>
    %c0_5 = arith.constant 0 : index
    %c0_6 = arith.constant 0 : index
    %8 = vector.load %arg4[%c0_5, %c0_6] : memref<16x1xf32, #tpu.memory_space<vmem>>, vector<16x1xf32>
    %9 = vector.broadcast %8 : vector<16x1xf32> to vector<16x8xf32>
    %10 = arith.mulf %7, %9 : vector<16x8xf32>
    %cst_7 = arith.constant dense<0.000000e+00> : vector<8xf32>
    %11 = vector.multi_reduction <add>, %10, %cst_7 [0] : vector<16x8xf32> to vector<8xf32>
    %12 = vector.shape_cast %11 : vector<8xf32> to vector<1x8xf32>
    %c0_8 = arith.constant 0 : index
    %c0_9 = arith.constant 0 : index
    %13 = memref.load %arg5[%c0_8, %c0_9] : memref<1x1xf32, #tpu.memory_space<smem>>
    %14 = vector.broadcast %13 : f32 to vector<1x8xf32>
    %15 = arith.addf %12, %14 : vector<1x8xf32>
    %16 = arith.negf %15 : vector<1x8xf32>
    %17 = math.exp %16 : vector<1x8xf32>
    %cst_10 = arith.constant 1.000000e+00 : f32
    %18 = vector.broadcast %cst_10 : f32 to vector<1x8xf32>
    %19 = arith.addf %18, %17 : vector<1x8xf32>
    %20 = arith.divf %18, %19 : vector<1x8xf32>
    %c0_11 = arith.constant 0 : index
    %c0_12 = arith.constant 0 : index
    %21 = vector.load %arg6[%c0_11, %c0_12] : memref<1x8xf32, #tpu.memory_space<vmem>>, vector<1x8xf32>
    tpu.vector_store %arg6[%c0_11, %c0_12], %20 {strides = array<i32>} : memref<1x8xf32, #tpu.memory_space<vmem>>, vector<1x8xf32>,
    return
  }
  func.func @transform_0(%arg0: i32) -> (i32, i32) {
    %c0_i32 = arith.constant 0 : i32
    %c0_i32_0 = arith.constant 0 : i32
    return %arg0, %c0_i32 : i32, i32
  }
  func.func @transform_1(%arg0: i32) -> (i32, i32) {
    %c0_i32 = arith.constant 0 : i32
    %c0_i32_0 = arith.constant 0 : i32
    %c0_i32_1 = arith.constant 0 : i32
    return %c0_i32, %c0_i32_0 : i32, i32
  }
  func.func @transform_2(%arg0: i32) -> (i32, i32) {
    %c0_i32 = arith.constant 0 : i32
    %c0_i32_0 = arith.constant 0 : i32
    %c0_i32_1 = arith.constant 0 : i32
    return %c0_i32, %c0_i32_0 : i32, i32
  }
  func.func @transform_3(%arg0: i32) -> (i32, i32) {
    %c0_i32 = arith.constant 0 : i32
    %c0_i32_0 = arith.constant 0 : i32
    %c0_i32_1 = arith.constant 0 : i32
    return %c0_i32, %c0_i32_0 : i32, i32
  }
  func.func @transform_4(%arg0: i32) -> (i32, i32) {
    %c0_i32 = arith.constant 0 : i32
    %c0_i32_0 = arith.constant 0 : i32
    %c0_i32_1 = arith.constant 0 : i32
    return %c0_i32, %c0_i32_0 : i32, i32
  }
  func.func @transform_5(%arg0: i32) -> (i32, i32) {
    %c0_i32 = arith.constant 0 : i32
    %c0_i32_0 = arith.constant 0 : i32
    return %c0_i32, %arg0 : i32, i32
  }
}

</mosaic_0001>

<llo_original>
// kernel: tpu_custom_call.1
$region0: #{tpu_custom_call.1}
  #allocation0 [shape = 'u32[]', space=smem, size = 0x4, offset = 0x4, fixed_abs, tag = 'smem constant byte address 0x4 - core index']
  #allocation1 [shape = 'u32[72,128]{1,0:T(1,128)}', space=vmem, size = 0x9000, scoped, tag = 'internal scratch']
  #allocation2 [shape = 'f32[1,1]{1,0:T(1,128)S(6)}', space=smem, size = 0x200, scoped, tag = 'scoped memory for tpu_custom_call.1']
  %s0 = inlined_call_operand.vmem [shape: f32[8,32], index: 0, kind: input, shape index: {}]
  %s1 = inlined_call_operand.vmem [shape: bf16[16,32], index: 1, kind: input, shape index: {}]
  %s2 = inlined_call_operand.vmem [shape: f32[16,1], index: 2, kind: input, shape index: {}]
  %s3 = inlined_call_operand.vmem [shape: f32[16,1], index: 3, kind: input, shape index: {}]
  %s4 = inlined_call_operand.<no memory space> [shape: f32[1,1], index: 4, kind: input, shape index: {}]
  %s5 = inlined_call_operand.hbm [shape: f32[1,8], index: 5, kind: output, shape index: {}]
  %s6 = sld [smem:[#allocation0]]
  $region30: #{tpu_custom_call.1} parent=0
    _
  %s8 = ssub.s32 1, %s6
  %s9 = scalar_select 0, %s8, %s6
  %10 = sst [smem:[#allocation2]] %s4
  $region1: #{tpu_custom_call.1} parent=0
    #allocation3 [shape = 'u8[512]{0}', space=vmem, size = 0x400, scoped, tag = 'output window, operand 0, single buffered']
    #allocation4 [shape = 's32[1]{0}', space=sflag, size = 0x4, scoped, tag = 'scoped memory for tpu_custom_call.1']
    %11 = vsyncpa [#allocation4], 0
    // Predicated region
    $region2: #{tpu_custom_call.1} parent=1 // pred_check
      _
    $region3: #{tpu_custom_call.1} parent=1 // pred_check_branch
      %13 = sbr.rel (0) target = $region5
    $region4: #{tpu_custom_call.1} parent=1 // pred_region
      _
    $region5: #{tpu_custom_call.1} parent=1 // pred_fallthru
      _
    // Predicated region
    $region6: #{tpu_custom_call.1} parent=1 // pred_check
      _
    $region7: #{tpu_custom_call.1} parent=1 // pred_check_branch
      %15 = sbr.rel (0) target = $region9
    $region8: #{tpu_custom_call.1} parent=1 // pred_region
      _
    $region9: #{tpu_custom_call.1} parent=1 // pred_fallthru
      _
    // Predicated region
    $region10: #{tpu_custom_call.1} parent=1 // pred_check
      _
    $region11: #{tpu_custom_call.1} parent=1 // pred_check_branch
      %17 = sbr.rel (0) target = $region13
    $region12: #{tpu_custom_call.1} parent=1 // pred_region
      _
    $region13: #{tpu_custom_call.1} parent=1 // pred_fallthru
      _
    // Predicated region
    $region14: #{tpu_custom_call.1} parent=1 // pred_check
      _
    $region15: #{tpu_custom_call.1} parent=1 // pred_check_branch
      %19 = sbr.rel (0) target = $region17
    $region16: #{tpu_custom_call.1} parent=1 // pred_region
      _
    $region17: #{tpu_custom_call.1} parent=1 // pred_fallthru
      _
    // Predicated region
    $region18: #{tpu_custom_call.1} parent=1 // pred_check
      _
    $region19: #{tpu_custom_call.1} parent=1 // pred_check_branch
      %21 = sbr.rel (0) target = $region21
    $region20: #{tpu_custom_call.1} parent=1 // pred_region
      _
    $region21: #{tpu_custom_call.1} parent=1 // pred_fallthru
      _
    %v23 = vld [vmem:[%s0] sm:$0xff]
    %v24 = vpack.c.bf16 %v23, %v23
    %v25 = vld [vmem:[%s1] sm:$0xf]
    %v26 = vld [vmem:[%s1 + $0x4] sm:$0xf]
    %v27 = vld [vmem:[%s2] sm:$0xff]
    %v28 = vld [vmem:[%s2 + $0x8] sm:$0xff]
    %30 = vset.pattern.permute.xlu0 0
    %31 = vperm.xlu0 %30, %v27
    %v32 = vpop.permute.xlu0 %31
    %35 = vset.pattern.permute.xlu0 0
    %36 = vperm.xlu0 %35, %v28
    %v37 = vpop.permute.xlu0 %36
    %v41 = vunpack.c.l.b16 %v25
    %v42 = vunpack.c.l.b16 %v26
    %v43 = vpack.c.b16 %v42, %v41
    %vm44 = vcmask 261120
    %v46 = vsel %vm44, %v43, 0
    %v49 = vsel %vm44, %v24, 0
    %51 = vmatpush.bf16.xpose.msra.mxu0 0
    %52 = vmatpush.bf16.xpose.msra.mxu0 0
    %53 = vmatpush.bf16.xpose.msra.mxu0 0
    %54 = vmatpush.bf16.xpose.msra.mxu0 0
    %55 = vmatpush.bf16.xpose.msra.mxu0 0
    %56 = vmatpush.bf16.xpose.msra.mxu0 0
    %57 = vmatpush.bf16.xpose.msra.mxu0 0
    %58 = vmatpush.bf16.xpose.msra.mxu0 %v49
    %59 = vmatmul.bf16.gmra.mxu0 %v46
    %v60 = vpop.f32.mrf.mxu0
    %v61 = vadd.f32 %v32, %v60
    %v62 = vpop.f32.mrf.mxu0
    %v63 = vadd.f32 %v37, %v62
    %64 = vdwg.mxu0
    %v65 = vtanh.pop %v61
    %v66 = vtanh.pop %v63
    %v67 = vld [vmem:[%s3] sm:$0xff]
    %v68 = vld [vmem:[%s3 + $0x8] sm:$0xff]
    %70 = vset.pattern.permute.xlu0 0
    %71 = vperm.xlu0 %70, %v67
    %v72 = vpop.permute.xlu0 %71
    %75 = vset.pattern.permute.xlu0 0
    %76 = vperm.xlu0 %75, %v68
    %v77 = vpop.permute.xlu0 %76
    %v79 = vmul.f32 %v65, %v72
    %v80 = vmul.f32 %v66, %v77
    %vm81 = vcmask 64512
    %v82 = vsel %vm81, %v79, 0.0
    %v83 = vsel %vm81, %v80, 0.0
    %v84 = vadd.f32 %v82, %v83
    %v85 = vrot.slane %v84, 4
    %v86 = vadd.f32 %v84, %v85
    %v87 = vrot.slane %v86, 2
    %v88 = vadd.f32 %v86, %v87
    %v89 = vrot.slane %v88, 1
    %v90 = vadd.f32 %v88, %v89
    %s91 = sld [smem:[#allocation2]]
    %v92 = vstv %s91
    %v93 = vadd.f32 %v90, %v92
    %v94 = vxor.u32 %v93, 2147483648
    %v95 = vmul.f32 %v94, 1.442695
    %v96 = vpow.pop %v95
    %v97 = vadd.f32 %v96, 1.0
    %v98 = vrcp.pop %v97
    %v99 = vmul.f32 %v97, %v98
    %v100 = vsub.f32 1.0, %v99
    %v101 = vmul.f32 %v98, %v100
    %v102 = vadd.f32 %v98, %v101
    %vm103 = vweird.f32 %v97
    %vm104 = vweird.f32 %v98
    %vm105 = vmor %vm103, %vm104
    %v106 = vsel %vm105, %v98, %v102
    %v107 = vand.u32 2147483647, %v97
    %vm108 = vcmp.eq.f32.partialorder %v107, 8.507059e+37
    %v109 = vand.u32 %v97, 2147483648
    %v110 = vor.u32 1.1754944e-38, %v109
    %v111 = vsel %vm108, %v110, %v106
    %v112 = vmul.f32 1.0, %v111
    %vm113 = vcmask 57344
    %114 = vst.msk [vmem:[#allocation3] sm:$0x1] %vm113, %v112
    // Predicated region
    $region22: #{tpu_custom_call.1} parent=1 // pred_check
      _
    $region23: #{tpu_custom_call.1} parent=1 // pred_check_branch
      %116 = sbr.rel (0) target = $region25
    $region24: #{tpu_custom_call.1} parent=1 // pred_region
      %118 = vsyncadd [#allocation4], 0
      %s120 = sshll.u32 [#allocation3], 4
      %s121 = int_to_ptr.vmem [resolvable:$true] %s120
      %s122 = sshll.u32 %s5, 4
      %s123 = int_to_ptr.hbm [resolvable:$true] %s122
      %125 = dma.vmem_to_hbm [thread:$0]  %s121, 16, %s123, [#allocation4]
    $region25: #{tpu_custom_call.1} parent=1 // pred_fallthru
      _
    // Predicated region
    $region26: #{tpu_custom_call.1} parent=1 // pred_check
      _
    $region27: #{tpu_custom_call.1} parent=1 // pred_check_branch
      %127 = sbr.rel (0) target = $region29
    $region28: #{tpu_custom_call.1} parent=1 // pred_region
      %129 = dma.done [#allocation4], 16
    $region29: #{tpu_custom_call.1} parent=1 // pred_fallthru
      _
    %130 = vsyncpa [#allocation4], 1

</llo_original>
